<compile_context>
chip_gen: v7x
topology: tpu7x:2x2x1
jax: 0.10.0
libtpu: 0.0.40
codegen_flags: <defaults>
</compile_context>

<pallas_src>
import functools

import jax
import jax.numpy as jnp
import numpy as np
from jax.experimental import pallas as pl
from jax.experimental.pallas import tpu as pltpu


_LANE = 128
_POINT_GRAN = 4096            # point-tile granularity -> every multi-step block
                              # has a sublane count that is a multiple of 32
                              # (valid tiling for f32 *and* int8)
_DEFAULT_POINTS_PER_STEP = 32768   # ~4.5 MiB of double-buffered VMEM per step


def _round_up(v, m):
    return -(-v // m) * m


def _num_tensorcores():
    """Best-effort TensorCore-per-chip count (2 on v7x); falls back to 1."""
    try:
        info = pltpu.get_tpu_info()
    except Exception:
        return 1
    for name in ("num_cores", "num_tensorcores", "tensorcore_count",
                 "cores_per_chip", "num_cores_per_chip"):
        v = getattr(info, name, None)
        if v is None:
            continue
        try:
            v = int(v)
        except Exception:
            continue
        if v == 2:
            return 2
    return 1


# -----------------------------------------------------------------------------
# Kernel: per-term masked error accumulation into a resident output block.
# -----------------------------------------------------------------------------
def _masked_err_kernel(*refs, l2_flags, mask_group):
    """refs = [x_0, y_0, ..., x_{T-1}, y_{T-1}, m_0, ..., m_{G-1}, out]

    x_t, y_t : (rows_t, 128) value / target blocks of term t (native dtype)
    m_g      : (rows_g, 128) int8 {0,1} element mask shared by every term whose
               channel count maps to group g.  The mask array is zero-padded
               past the valid data, so garbage from the (possibly OOB) last
               block and NaN/Inf at masked-out points are hard-zeroed.
    out      : (1, T, 1, 128) f32 block, resident across the step axis; acts as
               the accumulator (one per-lane partial-sum row per term).
    """
    T = len(l2_flags)
    G = max(mask_group) + 1
    x_refs = [refs[2 * t] for t in range(T)]
    y_refs = [refs[2 * t + 1] for t in range(T)]
    m_refs = [refs[2 * T + g] for g in range(G)]
    out_ref = refs[2 * T + G]

    @pl.when(pl.program_id(1) == 0)
    def _():
        out_ref[...] = jnp.zeros_like(out_ref)

    for t in range(T):
        d = x_refs[t][...].astype(jnp.float32) - y_refs[t][...].astype(jnp.float32)
        err = d * d if l2_flags[t] else jnp.abs(d)
        keep = m_refs[mask_group[t]][...].astype(jnp.int32) != 0
        err = jnp.where(keep, err, 0.0)              # NaN/Inf & OOB safe
        out_ref[0, t] = out_ref[0, t] + jnp.sum(err, axis=0, keepdims=True)


# -----------------------------------------------------------------------------
# Wrapper: one fused pallas_call for all loss terms sharing the same mask.
# -----------------------------------------------------------------------------
def _fused_masked_means(pairs, mask, *, points_per_step=_DEFAULT_POINTS_PER_STEP):
    """Masked-mean losses for a list of (x, y, use_l2) pairs sharing one mask.

    x, y : (B, N, C) or (B, N) arrays (any float dtype, kept native)
    mask : (N,), (1, N) or (B, N) boolean / {0,1} mask.

    Each returned scalar equals loss_fn(x[mask_expanded], y[mask_expanded])
    with reduction='mean', and 0.0 when the mask selects nothing (matching the
    PyTorch guard in MainLoss).
    """
    terms = []
    for x, y, use_l2 in pairs:
        x = jnp.asarray(x)
        y = jnp.asarray(y)
        if x.ndim == 2:
            x = x[..., None]
        if y.ndim == 2:
            y = y[..., None]
        assert x.shape == y.shape, (x.shape, y.shape)
        terms.append((x, y, bool(use_l2)))

    B, N = terms[0][0].shape[:2]
    for x, y, _ in terms:
        assert x.shape[:2] == (B, N), "all loss terms must share (B, N)"
    points = B * N

    # ---- per-point {0,1} mask, flattened to (B*N,) ----
    mask = jnp.asarray(mask)
    if mask.ndim == 2 and mask.shape[0] == 1:
        mask = mask[0]
    if mask.ndim == 1:
        if mask.shape[0] != N:
            raise ValueError(f"mask shape {mask.shape} incompatible with N={N}")
        per_point = jnp.broadcast_to(mask[None, :], (B, N))
    elif mask.ndim == 2 and mask.shape == (B, N):
        per_point = mask
    else:
        raise ValueError(f"mask shape {mask.shape} incompatible with (B,N)=({B},{N})")
    per_point = per_point.astype(bool)
    pm_i8 = per_point.reshape(-1).astype(jnp.int8)                 # (B*N,) tiny
    cnt = jnp.count_nonzero(per_point).astype(jnp.float32)

    # ---- grid selection ----
    if points <= points_per_step:
        # Single step: every block is the FULL array (any alignment is legal).
        single, steps, nsplit = True, 1, 1
        ppstep = points
    else:
        assert points_per_step % _POINT_GRAN == 0
        single = False
        ppstep = points_per_step
        steps_total = -(-points // ppstep)
        cores = _num_tensorcores()
        # Only split across TensorCores when it divides evenly (keeps every
        # block at most *partially* out of bounds).
        nsplit = cores if (cores > 1 and steps_total % cores == 0) else 1
        steps = steps_total // nsplit

    imap = lambda s, i: (s * steps + i, 0)

    # ---- per-term inputs (free reshapes, native dtypes) ----
    xy_arrays, in_specs = [], []
    chans, l2_flags, mask_group = [], [], []
    group_of = {}                                   # channel count -> group idx
    for x, y, use_l2 in terms:
        C = x.shape[-1]
        K = points * C
        Kp = _round_up(K, _LANE)
        rows = Kp // _LANE
        xf = x.reshape(-1)
        yf = y.reshape(-1)
        if Kp != K:
            # TODO(synk): unaligned B*N*C falls back to a small 128-pad (full
            # copy of this term); 128-aligned sizes take the copy-free path.
            xf = jnp.pad(xf, (0, Kp - K))
            yf = jnp.pad(yf, (0, Kp - K))
        x2 = xf.reshape(rows, _LANE)
        y2 = yf.reshape(rows, _LANE)
        brows = rows if single else ppstep * C // _LANE
        xy_arrays += [x2, y2]
        in_specs += [pl.BlockSpec((brows, _LANE), imap),
                     pl.BlockSpec((brows, _LANE), imap)]
        chans.append(C)
        l2_flags.append(use_l2)
        if C not in group_of:
            group_of[C] = len(group_of)
        mask_group.append(group_of[C])

    # ---- per-channel-count int8 element masks (shared, padded to coverage) ----
    mask_arrays, mask_specs = [], []
    for C, _g in sorted(group_of.items(), key=lambda kv: kv[1]):
        K = points * C
        if single:
            rows_m = _round_up(K, _LANE) // _LANE
            brows_m = rows_m
        else:
            brows_m = ppstep * C // _LANE
            rows_m = nsplit * steps * brows_m
        total = rows_m * _LANE
        m_el = jnp.broadcast_to(pm_i8[:, None], (points, C)).reshape(-1)
        if total > K:
            m_el = jnp.concatenate([m_el, jnp.zeros((total - K,), jnp.int8)])
        mask_arrays.append(m_el.reshape(rows_m, _LANE))
        mask_specs.append(pl.BlockSpec((brows_m, _LANE), imap))

    T = len(terms)
    kernel = functools.partial(_masked_err_kernel,
                               l2_flags=tuple(l2_flags),
                               mask_group=tuple(mask_group))
    if nsplit > 1:
        sem = (pltpu.CORE_PARALLEL, pltpu.ARBITRARY)
    else:
        sem = ("arbitrary", "arbitrary")

    out = pl.pallas_call(
        kernel,
        out_shape=jax.ShapeDtypeStruct((nsplit, T, 1, _LANE), jnp.float32),
        grid=(nsplit, steps),
        in_specs=in_specs + mask_specs,
        out_specs=pl.BlockSpec((1, T, 1, _LANE), lambda s, i: (s, 0, 0, 0)),
        compiler_params=pltpu.CompilerParams(dimension_semantics=sem),
    )(*xy_arrays, *mask_arrays)

    sums = jnp.sum(out, axis=(0, 2, 3))                       # (T,) f32
    losses = []
    for t, C in enumerate(chans):
        denom = cnt * jnp.float32(C)
        losses.append(jnp.where(cnt > 0,
                                sums[t] / jnp.maximum(denom, 1.0),
                                jnp.float32(0.0)))
    return losses


# -----------------------------------------------------------------------------
# MainLoss forward, mirroring the PyTorch module's semantics.
# -----------------------------------------------------------------------------
class MainLossPallas:
    def __init__(self, sg_rgb_weight, loss_type="L1", albedo_smooth_weight=0,
                 rough_smooth_weight=0, vis_weight=1.0):
        if loss_type not in ("L1", "L2"):
            raise Exception("Unknown loss_type!")
        self.sg_rgb_weight = sg_rgb_weight
        self.albedo_smooth_weight = albedo_smooth_weight
        self.rough_smooth_weight = rough_smooth_weight
        self.vis_weight = vis_weight
        self.img_l2 = (loss_type == "L2")      # rgb / vis terms
        # smooth_loss is always L1

    # Single-term convenience wrappers (API parity with the PyTorch module).
    def get_rgb_loss(self, sg_rgb_values, rgb_gt, network_object_mask, object_mask):
        mask = jnp.logical_and(network_object_mask, object_mask)
        return _fused_masked_means([(sg_rgb_values, rgb_gt, self.img_l2)], mask)[0]

    def get_vis_loss(self, vis_values, vis_gt, network_object_mask, object_mask):
        mask = jnp.logical_and(network_object_mask, object_mask)
        return _fused_masked_means([(vis_values, vis_gt, self.img_l2)], mask)[0]

    def get_smooth_loss(self, x, x_jitter, network_object_mask, object_mask):
        mask = jnp.logical_and(network_object_mask, object_mask)
        return _fused_masked_means([(x, x_jitter, False)], mask)[0]

    def __call__(self, model_outputs, ground_truth, model_input=None):
        rgb_gt = ground_truth["rgb"]
        network_object_mask = model_outputs["network_object_mask"]
        object_mask = model_outputs["object_mask"]
        mask = jnp.logical_and(network_object_mask, object_mask)

        # (name, x, y, use_l2, weight) — all terms computed in ONE fused kernel.
        plan = [("sg_rgb_loss", model_outputs["sg_rgb_values"], rgb_gt,
                 self.img_l2, self.sg_rgb_weight)]

        if "albedo_jitter" in model_outputs and self.albedo_smooth_weight > 0:
            plan.append(("albedo_smooth_loss", model_outputs["albedo_values"],
                         model_outputs["albedo_jitter"], False,
                         self.albedo_smooth_weight))
        if "rough_jitter" in model_outputs and self.rough_smooth_weight > 0:
            plan.append(("rough_smooth_loss", model_outputs["rough_values"],
                         model_outputs["rough_jitter"], False,
                         self.rough_smooth_weight))

        if (model_input is not None and "visibility" in model_input
                and "visibility" in model_outputs):
            if ("vis_train_gt" in model_input and "light_vis_train" in model_input
                    and "vis_train" in model_outputs):
                vis_x = model_outputs["vis_train"][..., 0]
                vis_y = model_input["vis_train_gt"]
            elif "light_vis_train" in model_input and "vis_train" in model_outputs:
                vis_x = model_outputs["vis_train"][..., 0]
                vis_y = model_input["visibility"]
            else:
                vis_x = model_outputs["visibility"][..., 0]
                vis_y = model_input["visibility"]
            plan.append(("vis_loss", vis_x, vis_y, self.img_l2, self.vis_weight))

        losses = _fused_masked_means([(x, y, l2) for _, x, y, l2, _ in plan], mask)

        lterm = {"albedo_smooth_loss": None, "rough_smooth_loss": None}
        total = jnp.float32(0.0)
        for (name, _, _, _, w), lv in zip(plan, losses):
            lterm[name] = lv
            total = total + w * lv
        lterm["loss"] = total
        return lterm


# -----------------------------------------------------------------------------
# Pure-JAX reference (for the smoke test only).
# -----------------------------------------------------------------------------
def _ref_masked_mean(x, y, mask, use_l2):
    x = jnp.asarray(x)
    y = jnp.asarray(y)
    if x.ndim == 2:
        x = x[..., None]
        y = y[..., None]
    m = jnp.broadcast_to(mask[None, :, None], x.shape)
    d = x.astype(jnp.float32) - y.astype(jnp.float32)
    e = d * d if use_l2 else jnp.abs(d)
    s = jnp.sum(jnp.where(m, e, 0.0))
    c = jnp.sum(m.astype(jnp.float32))
    return jnp.where(c > 0, s / jnp.maximum(c, 1.0), jnp.float32(0.0))


def _make_inputs(key, B, N):
    ks = jax.random.split(key, 12)
    model_outputs = {
        "network_object_mask": jax.random.bernoulli(ks[0], 0.7, (N,)),
        "object_mask": jax.random.bernoulli(ks[1], 0.7, (N,)),
        "sg_rgb_values": jax.random.uniform(ks[2], (B, N, 3), jnp.float32),
        "albedo_values": jax.random.uniform(ks[3], (B, N, 3), jnp.float32),
        "albedo_jitter": jax.random.uniform(ks[4], (B, N, 3), jnp.float32),
        "rough_values": jax.random.uniform(ks[5], (B, N, 1), jnp.float32),
        "rough_jitter": jax.random.uniform(ks[6], (B, N, 1), jnp.float32),
        "visibility": jax.random.uniform(ks[7], (B, N, 1), jnp.float32),
        "vis_train": jax.random.uniform(ks[8], (B, N, 1), jnp.float32),
    }
    ground_truth = {"rgb": jax.random.uniform(ks[9], (B, N, 3), jnp.float32)}
    model_input = {
        "visibility": jax.random.uniform(ks[10], (B, N), jnp.float32),
        "light_vis_train": jax.random.uniform(ks[11], (B, N), jnp.float32),
    }
    return model_outputs, ground_truth, model_input


if __name__ == "__main__":
    key = jax.random.PRNGKey(0)
    k1, k2 = jax.random.split(key)

    # ---------------- Test 1: small shapes, L1, single-step path -------------
    B, N = 2, 16
    mo, gt, mi = _make_inputs(k1, B, N)
    mask = jnp.logical_and(mo["network_object_mask"], mo["object_mask"])

    loss_fn = MainLossPallas(sg_rgb_weight=1.0, loss_type="L1",
                             albedo_smooth_weight=0.1, rough_smooth_weight=0.1,
                             vis_weight=1.0)
    lterm = loss_fn(mo, gt, mi)
    jax.block_until_ready(lterm["loss"])

    refs1 = {
        "sg_rgb_loss": _ref_masked_mean(mo["sg_rgb_values"], gt["rgb"], mask, False),
        "albedo_smooth_loss": _ref_masked_mean(mo["albedo_values"], mo["albedo_jitter"], mask, False),
        "rough_smooth_loss": _ref_masked_mean(mo["rough_values"], mo["rough_jitter"], mask, False),
        "vis_loss": _ref_masked_mean(mo["vis_train"][..., 0], mi["visibility"], mask, False),
    }
    ref_total1 = (1.0 * refs1["sg_rgb_loss"] + 0.1 * refs1["albedo_smooth_loss"]
                  + 0.1 * refs1["rough_smooth_loss"] + 1.0 * refs1["vis_loss"])
    for name, rv in refs1.items():
        np.testing.assert_allclose(np.array(lterm[name]), np.array(rv),
                                   rtol=3e-5, atol=1e-6)
    np.testing.assert_allclose(np.array(lterm["loss"]), np.array(ref_total1),
                               rtol=3e-5, atol=1e-6)

    # ------- Test 2: bigger shapes, L2, multi-step + OOB tail + NaN/Inf ------
    B2, N2 = 2, 2304                      # B*N = 4608 points (128-aligned)
    mo2, gt2, mi2 = _make_inputs(k2, B2, N2)
    mask2 = jnp.logical_and(mo2["network_object_mask"], mo2["object_mask"])
    # NaN / Inf at masked-OUT points must not poison the loss.
    mo2["sg_rgb_values"] = jnp.where(mask2[None, :, None],
                                     mo2["sg_rgb_values"], jnp.nan)
    mo2["rough_jitter"] = jnp.where(mask2[None, :, None],
                                    mo2["rough_jitter"], jnp.inf)

    pairs2 = [
        (mo2["sg_rgb_values"], gt2["rgb"], True),
        (mo2["albedo_values"], mo2["albedo_jitter"], False),
        (mo2["rough_values"], mo2["rough_jitter"], False),
        (mo2["vis_train"][..., 0], mi2["visibility"], True),
    ]
    # Force the multi-step path (steps=2, ragged last block handled by mask).
    got2 = _fused_masked_means(pairs2, mask2, points_per_step=4096)
    jax.block_until_ready(got2)
    refs2 = [_ref_masked_mean(x, y, mask2, l2) for x, y, l2 in pairs2]
    for g, r in zip(got2, refs2):
        np.testing.assert_allclose(np.array(g), np.array(r), rtol=3e-5, atol=1e-6)

    loss_fn2 = MainLossPallas(sg_rgb_weight=1.0, loss_type="L2",
                              albedo_smooth_weight=0.1, rough_smooth_weight=0.1,
                              vis_weight=0.5)
    lterm2 = loss_fn2(mo2, gt2, mi2)
    jax.block_until_ready(lterm2["loss"])
    ref_total2 = (1.0 * refs2[0] + 0.1 * refs2[1] + 0.1 * refs2[2] + 0.5 * refs2[3])
    np.testing.assert_allclose(np.array(lterm2["loss"]), np.array(ref_total2),
                               rtol=3e-5, atol=1e-6)

    # ---------------- Test 3: empty mask -> every loss is exactly 0 ----------
    mo3 = dict(mo)
    mo3["network_object_mask"] = jnp.zeros((N,), bool)
    mo3["object_mask"] = jnp.zeros((N,), bool)
    lterm3 = loss_fn(mo3, gt, mi)
    jax.block_until_ready(lterm3["loss"])
    assert float(lterm3["loss"]) == 0.0

    print("KERNEL_OK")
</pallas_src>

<mosaic_0001>
module attributes {stable_mosaic.version = 11 : i64} {
  func.func @_masked_err_kernel(%arg0: i32, %arg1: i32, %arg2: memref<1x128xf32, #tpu.memory_space<vmem>>, %arg3: memref<1x128xf32, #tpu.memory_space<vmem>>, %arg4: memref<1x128xf32, #tpu.memory_space<vmem>>, %arg5: memref<1x128xf32, #tpu.memory_space<vmem>>, %arg6: memref<1x128xf32, #tpu.memory_space<vmem>>, %arg7: memref<1x128xf32, #tpu.memory_space<vmem>>, %arg8: memref<1x128xf32, #tpu.memory_space<vmem>>, %arg9: memref<1x128xf32, #tpu.memory_space<vmem>>, %arg10: memref<1x128xi8, #tpu.memory_space<vmem>>, %arg11: memref<1x128xi8, #tpu.memory_space<vmem>>, %arg12: memref<1x4x1x128xf32, #tpu.memory_space<vmem>>) attributes {dimension_semantics = [#tpu.dimension_semantics<arbitrary>, #tpu.dimension_semantics<arbitrary>], iteration_bounds = array<i64: 1, 1>, scalar_prefetch = 0 : i64, scratch_operands = 0 : i64, tpu.core_type = #tpu.core_type<tc>, window_params = [{transform_indices = @transform_0, window_bounds = array<i64: 1, 128>}, {transform_indices = @transform_1, window_bounds = array<i64: 1, 128>}, {transform_indices = @transform_2, window_bounds = array<i64: 1, 128>}, {transform_indices = @transform_3, window_bounds = array<i64: 1, 128>}, {transform_indices = @transform_4, window_bounds = array<i64: 1, 128>}, {transform_indices = @transform_5, window_bounds = array<i64: 1, 128>}, {transform_indices = @transform_6, window_bounds = array<i64: 1, 128>}, {transform_indices = @transform_7, window_bounds = array<i64: 1, 128>}, {transform_indices = @transform_8, window_bounds = array<i64: 1, 128>}, {transform_indices = @transform_9, window_bounds = array<i64: 1, 128>}, {transform_indices = @transform_10, window_bounds = array<i64: 1, 4, 1, 128>}]} {
    %c0_i32 = arith.constant 0 : i32
    %0 = arith.cmpi eq, %arg1, %c0_i32 : i32
    %1 = arith.extui %0 : i1 to i32
    %c0_i32_0 = arith.constant 0 : i32
    %2 = arith.cmpi ne, %1, %c0_i32_0 : i32
    scf.if %2 {
      %cst_64 = arith.constant 0.000000e+00 : f32
      %75 = vector.broadcast %cst_64 : f32 to vector<1x4x1x128xf32>
      %c0_65 = arith.constant 0 : index
      %c0_66 = arith.constant 0 : index
      %c0_67 = arith.constant 0 : index
      %c0_68 = arith.constant 0 : index
      %76 = vector.load %arg12[%c0_65, %c0_66, %c0_67, %c0_68] : memref<1x4x1x128xf32, #tpu.memory_space<vmem>>, vector<1x4x1x128xf32>
      tpu.vector_store %arg12[%c0_65, %c0_66, %c0_67, %c0_68], %75 {strides = array<i32>} : memref<1x4x1x128xf32, #tpu.memory_space<vmem>>, vector<1x4x1x128xf32>,
    } else {
    }
    %c0 = arith.constant 0 : index
    %c0_1 = arith.constant 0 : index
    %3 = vector.load %arg2[%c0, %c0_1] : memref<1x128xf32, #tpu.memory_space<vmem>>, vector<1x128xf32>
    %c0_2 = arith.constant 0 : index
    %c0_3 = arith.constant 0 : index
    %4 = vector.load %arg3[%c0_2, %c0_3] : memref<1x128xf32, #tpu.memory_space<vmem>>, vector<1x128xf32>
    %5 = arith.subf %3, %4 : vector<1x128xf32>
    %6 = math.absf %5 : vector<1x128xf32>
    %c0_4 = arith.constant 0 : index
    %c0_5 = arith.constant 0 : index
    %7 = vector.load %arg10[%c0_4, %c0_5] : memref<1x128xi8, #tpu.memory_space<vmem>>, vector<1x128xi8>
    %8 = arith.extsi %7 : vector<1x128xi8> to vector<1x128xi32>
    %c0_i32_6 = arith.constant 0 : i32
    %9 = vector.broadcast %c0_i32_6 : i32 to vector<1x128xi32>
    %10 = arith.cmpi ne, %8, %9 : vector<1x128xi32>
    %cst = arith.constant 0.000000e+00 : f32
    %11 = vector.broadcast %cst : f32 to vector<1x128xf32>
    %12 = arith.select %10, %6, %11 : vector<1x128xi1>, vector<1x128xf32>
    %c0_7 = arith.constant 0 : index
    %c0_8 = arith.constant 0 : index
    %c0_9 = arith.constant 0 : index
    %c0_10 = arith.constant 0 : index
    %13 = vector.load %arg12[%c0_7, %c0_8, %c0_9, %c0_10] : memref<1x4x1x128xf32, #tpu.memory_space<vmem>>, vector<1x1x1x128xf32>
    %14 = vector.shape_cast %13 : vector<1x1x1x128xf32> to vector<1x128xf32>
    %cst_11 = arith.constant dense<0.000000e+00> : vector<128xf32>
    %15 = vector.multi_reduction <add>, %12, %cst_11 [0] : vector<1x128xf32> to vector<128xf32>
    %16 = vector.shape_cast %15 : vector<128xf32> to vector<1x128xf32>
    %17 = arith.addf %14, %16 : vector<1x128xf32>
    %c0_12 = arith.constant 0 : index
    %c0_13 = arith.constant 0 : index
    %c0_14 = arith.constant 0 : index
    %c0_15 = arith.constant 0 : index
    %18 = vector.load %arg12[%c0_12, %c0_13, %c0_14, %c0_15] : memref<1x4x1x128xf32, #tpu.memory_space<vmem>>, vector<1x1x1x128xf32>
    %19 = vector.shape_cast %18 : vector<1x1x1x128xf32> to vector<1x128xf32>
    %20 = vector.shape_cast %17 : vector<1x128xf32> to vector<1x1x1x128xf32>
    tpu.vector_store %arg12[%c0_12, %c0_13, %c0_14, %c0_15], %20 {strides = array<i32>} : memref<1x4x1x128xf32, #tpu.memory_space<vmem>>, vector<1x1x1x128xf32>,
    %c0_16 = arith.constant 0 : index
    %c0_17 = arith.constant 0 : index
    %21 = vector.load %arg4[%c0_16, %c0_17] : memref<1x128xf32, #tpu.memory_space<vmem>>, vector<1x128xf32>
    %c0_18 = arith.constant 0 : index
    %c0_19 = arith.constant 0 : index
    %22 = vector.load %arg5[%c0_18, %c0_19] : memref<1x128xf32, #tpu.memory_space<vmem>>, vector<1x128xf32>
    %23 = arith.subf %21, %22 : vector<1x128xf32>
    %24 = math.absf %23 : vector<1x128xf32>
    %c0_20 = arith.constant 0 : index
    %c0_21 = arith.constant 0 : index
    %25 = vector.load %arg10[%c0_20, %c0_21] : memref<1x128xi8, #tpu.memory_space<vmem>>, vector<1x128xi8>
    %26 = arith.extsi %25 : vector<1x128xi8> to vector<1x128xi32>
    %c0_i32_22 = arith.constant 0 : i32
    %27 = vector.broadcast %c0_i32_22 : i32 to vector<1x128xi32>
    %28 = arith.cmpi ne, %26, %27 : vector<1x128xi32>
    %cst_23 = arith.constant 0.000000e+00 : f32
    %29 = vector.broadcast %cst_23 : f32 to vector<1x128xf32>
    %30 = arith.select %28, %24, %29 : vector<1x128xi1>, vector<1x128xf32>
    %c0_24 = arith.constant 0 : index
    %c1 = arith.constant 1 : index
    %c0_25 = arith.constant 0 : index
    %c0_26 = arith.constant 0 : index
    %31 = vector.load %arg12[%c0_24, %c1, %c0_25, %c0_26] : memref<1x4x1x128xf32, #tpu.memory_space<vmem>>, vector<1x1x1x128xf32>
    %32 = vector.shape_cast %31 : vector<1x1x1x128xf32> to vector<1x128xf32>
    %cst_27 = arith.constant dense<0.000000e+00> : vector<128xf32>
    %33 = vector.multi_reduction <add>, %30, %cst_27 [0] : vector<1x128xf32> to vector<128xf32>
    %34 = vector.shape_cast %33 : vector<128xf32> to vector<1x128xf32>
    %35 = arith.addf %32, %34 : vector<1x128xf32>
    %c0_28 = arith.constant 0 : index
    %c1_29 = arith.constant 1 : index
    %c0_30 = arith.constant 0 : index
    %c0_31 = arith.constant 0 : index
    %36 = vector.load %arg12[%c0_28, %c1_29, %c0_30, %c0_31] : memref<1x4x1x128xf32, #tpu.memory_space<vmem>>, vector<1x1x1x128xf32>
    %37 = vector.shape_cast %36 : vector<1x1x1x128xf32> to vector<1x128xf32>
    %38 = vector.shape_cast %35 : vector<1x128xf32> to vector<1x1x1x128xf32>
    tpu.vector_store %arg12[%c0_28, %c1_29, %c0_30, %c0_31], %38 {strides = array<i32>} : memref<1x4x1x128xf32, #tpu.memory_space<vmem>>, vector<1x1x1x128xf32>,
    %c0_32 = arith.constant 0 : index
    %c0_33 = arith.constant 0 : index
    %39 = vector.load %arg6[%c0_32, %c0_33] : memref<1x128xf32, #tpu.memory_space<vmem>>, vector<1x128xf32>
    %c0_34 = arith.constant 0 : index
    %c0_35 = arith.constant 0 : index
    %40 = vector.load %arg7[%c0_34, %c0_35] : memref<1x128xf32, #tpu.memory_space<vmem>>, vector<1x128xf32>
    %41 = arith.subf %39, %40 : vector<1x128xf32>
    %42 = math.absf %41 : vector<1x128xf32>
    %c0_36 = arith.constant 0 : index
    %c0_37 = arith.constant 0 : index
    %43 = vector.load %arg11[%c0_36, %c0_37] : memref<1x128xi8, #tpu.memory_space<vmem>>, vector<1x128xi8>
    %44 = arith.extsi %43 : vector<1x128xi8> to vector<1x128xi32>
    %c0_i32_38 = arith.constant 0 : i32
    %45 = vector.broadcast %c0_i32_38 : i32 to vector<1x128xi32>
    %46 = arith.cmpi ne, %44, %45 : vector<1x128xi32>
    %cst_39 = arith.constant 0.000000e+00 : f32
    %47 = vector.broadcast %cst_39 : f32 to vector<1x128xf32>
    %48 = arith.select %46, %42, %47 : vector<1x128xi1>, vector<1x128xf32>
    %c0_40 = arith.constant 0 : index
    %c2 = arith.constant 2 : index
    %c0_41 = arith.constant 0 : index
    %c0_42 = arith.constant 0 : index
    %49 = vector.load %arg12[%c0_40, %c2, %c0_41, %c0_42] : memref<1x4x1x128xf32, #tpu.memory_space<vmem>>, vector<1x1x1x128xf32>
    %50 = vector.shape_cast %49 : vector<1x1x1x128xf32> to vector<1x128xf32>
    %cst_43 = arith.constant dense<0.000000e+00> : vector<128xf32>
    %51 = vector.multi_reduction <add>, %48, %cst_43 [0] : vector<1x128xf32> to vector<128xf32>
    %52 = vector.shape_cast %51 : vector<128xf32> to vector<1x128xf32>
    %53 = arith.addf %50, %52 : vector<1x128xf32>
    %c0_44 = arith.constant 0 : index
    %c2_45 = arith.constant 2 : index
    %c0_46 = arith.constant 0 : index
    %c0_47 = arith.constant 0 : index
    %54 = vector.load %arg12[%c0_44, %c2_45, %c0_46, %c0_47] : memref<1x4x1x128xf32, #tpu.memory_space<vmem>>, vector<1x1x1x128xf32>
    %55 = vector.shape_cast %54 : vector<1x1x1x128xf32> to vector<1x128xf32>
    %56 = vector.shape_cast %53 : vector<1x128xf32> to vector<1x1x1x128xf32>
    tpu.vector_store %arg12[%c0_44, %c2_45, %c0_46, %c0_47], %56 {strides = array<i32>} : memref<1x4x1x128xf32, #tpu.memory_space<vmem>>, vector<1x1x1x128xf32>,
    %c0_48 = arith.constant 0 : index
    %c0_49 = arith.constant 0 : index
    %57 = vector.load %arg8[%c0_48, %c0_49] : memref<1x128xf32, #tpu.memory_space<vmem>>, vector<1x128xf32>
    %c0_50 = arith.constant 0 : index
    %c0_51 = arith.constant 0 : index
    %58 = vector.load %arg9[%c0_50, %c0_51] : memref<1x128xf32, #tpu.memory_space<vmem>>, vector<1x128xf32>
    %59 = arith.subf %57, %58 : vector<1x128xf32>
    %60 = math.absf %59 : vector<1x128xf32>
    %c0_52 = arith.constant 0 : index
    %c0_53 = arith.constant 0 : index
    %61 = vector.load %arg11[%c0_52, %c0_53] : memref<1x128xi8, #tpu.memory_space<vmem>>, vector<1x128xi8>
    %62 = arith.extsi %61 : vector<1x128xi8> to vector<1x128xi32>
    %c0_i32_54 = arith.constant 0 : i32
    %63 = vector.broadcast %c0_i32_54 : i32 to vector<1x128xi32>
    %64 = arith.cmpi ne, %62, %63 : vector<1x128xi32>
    %cst_55 = arith.constant 0.000000e+00 : f32
    %65 = vector.broadcast %cst_55 : f32 to vector<1x128xf32>
    %66 = arith.select %64, %60, %65 : vector<1x128xi1>, vector<1x128xf32>
    %c0_56 = arith.constant 0 : index
    %c3 = arith.constant 3 : index
    %c0_57 = arith.constant 0 : index
    %c0_58 = arith.constant 0 : index
    %67 = vector.load %arg12[%c0_56, %c3, %c0_57, %c0_58] : memref<1x4x1x128xf32, #tpu.memory_space<vmem>>, vector<1x1x1x128xf32>
    %68 = vector.shape_cast %67 : vector<1x1x1x128xf32> to vector<1x128xf32>
    %cst_59 = arith.constant dense<0.000000e+00> : vector<128xf32>
    %69 = vector.multi_reduction <add>, %66, %cst_59 [0] : vector<1x128xf32> to vector<128xf32>
    %70 = vector.shape_cast %69 : vector<128xf32> to vector<1x128xf32>
    %71 = arith.addf %68, %70 : vector<1x128xf32>
    %c0_60 = arith.constant 0 : index
    %c3_61 = arith.constant 3 : index
    %c0_62 = arith.constant 0 : index
    %c0_63 = arith.constant 0 : index
    %72 = vector.load %arg12[%c0_60, %c3_61, %c0_62, %c0_63] : memref<1x4x1x128xf32, #tpu.memory_space<vmem>>, vector<1x1x1x128xf32>
    %73 = vector.shape_cast %72 : vector<1x1x1x128xf32> to vector<1x128xf32>
    %74 = vector.shape_cast %71 : vector<1x128xf32> to vector<1x1x1x128xf32>
    tpu.vector_store %arg12[%c0_60, %c3_61, %c0_62, %c0_63], %74 {strides = array<i32>} : memref<1x4x1x128xf32, #tpu.memory_space<vmem>>, vector<1x1x1x128xf32>,
    return
  }
  func.func @transform_0(%arg0: i32, %arg1: i32) -> (i32, i32) {
    %c1_i32 = arith.constant 1 : i32
    %0 = arith.muli %arg0, %c1_i32 : i32
    %1 = arith.addi %0, %arg1 : i32
    %c0_i32 = arith.constant 0 : i32
    %c0_i32_0 = arith.constant 0 : i32
    return %1, %c0_i32 : i32, i32
  }
  func.func @transform_1(%arg0: i32, %arg1: i32) -> (i32, i32) {
    %c1_i32 = arith.constant 1 : i32
    %0 = arith.muli %arg0, %c1_i32 : i32
    %1 = arith.addi %0, %arg1 : i32
    %c0_i32 = arith.constant 0 : i32
    %c0_i32_0 = arith.constant 0 : i32
    return %1, %c0_i32 : i32, i32
  }
  func.func @transform_2(%arg0: i32, %arg1: i32) -> (i32, i32) {
    %c1_i32 = arith.constant 1 : i32
    %0 = arith.muli %arg0, %c1_i32 : i32
    %1 = arith.addi %0, %arg1 : i32
    %c0_i32 = arith.constant 0 : i32
    %c0_i32_0 = arith.constant 0 : i32
    return %1, %c0_i32 : i32, i32
  }
  func.func @transform_3(%arg0: i32, %arg1: i32) -> (i32, i32) {
    %c1_i32 = arith.constant 1 : i32
    %0 = arith.muli %arg0, %c1_i32 : i32
    %1 = arith.addi %0, %arg1 : i32
    %c0_i32 = arith.constant 0 : i32
    %c0_i32_0 = arith.constant 0 : i32
    return %1, %c0_i32 : i32, i32
  }
  func.func @transform_4(%arg0: i32, %arg1: i32) -> (i32, i32) {
    %c1_i32 = arith.constant 1 : i32
    %0 = arith.muli %arg0, %c1_i32 : i32
    %1 = arith.addi %0, %arg1 : i32
    %c0_i32 = arith.constant 0 : i32
    %c0_i32_0 = arith.constant 0 : i32
    return %1, %c0_i32 : i32, i32
  }
  func.func @transform_5(%arg0: i32, %arg1: i32) -> (i32, i32) {
    %c1_i32 = arith.constant 1 : i32
    %0 = arith.muli %arg0, %c1_i32 : i32
    %1 = arith.addi %0, %arg1 : i32
    %c0_i32 = arith.constant 0 : i32
    %c0_i32_0 = arith.constant 0 : i32
    return %1, %c0_i32 : i32, i32
  }
  func.func @transform_6(%arg0: i32, %arg1: i32) -> (i32, i32) {
    %c1_i32 = arith.constant 1 : i32
    %0 = arith.muli %arg0, %c1_i32 : i32
    %1 = arith.addi %0, %arg1 : i32
    %c0_i32 = arith.constant 0 : i32
    %c0_i32_0 = arith.constant 0 : i32
    return %1, %c0_i32 : i32, i32
  }
  func.func @transform_7(%arg0: i32, %arg1: i32) -> (i32, i32) {
    %c1_i32 = arith.constant 1 : i32
    %0 = arith.muli %arg0, %c1_i32 : i32
    %1 = arith.addi %0, %arg1 : i32
    %c0_i32 = arith.constant 0 : i32
    %c0_i32_0 = arith.constant 0 : i32
    return %1, %c0_i32 : i32, i32
  }
  func.func @transform_8(%arg0: i32, %arg1: i32) -> (i32, i32) {
    %c1_i32 = arith.constant 1 : i32
    %0 = arith.muli %arg0, %c1_i32 : i32
    %1 = arith.addi %0, %arg1 : i32
    %c0_i32 = arith.constant 0 : i32
    %c0_i32_0 = arith.constant 0 : i32
    return %1, %c0_i32 : i32, i32
  }
  func.func @transform_9(%arg0: i32, %arg1: i32) -> (i32, i32) {
    %c1_i32 = arith.constant 1 : i32
    %0 = arith.muli %arg0, %c1_i32 : i32
    %1 = arith.addi %0, %arg1 : i32
    %c0_i32 = arith.constant 0 : i32
    %c0_i32_0 = arith.constant 0 : i32
    return %1, %c0_i32 : i32, i32
  }
  func.func @transform_10(%arg0: i32, %arg1: i32) -> (i32, i32, i32, i32) {
    %c0_i32 = arith.constant 0 : i32
    %c0_i32_0 = arith.constant 0 : i32
    %c0_i32_1 = arith.constant 0 : i32
    %c0_i32_2 = arith.constant 0 : i32
    return %arg0, %c0_i32, %c0_i32_0, %c0_i32_1 : i32, i32, i32, i32
  }
}

</mosaic_0001>

<llo_original>
// kernel: tpu_custom_call.1
$region0: #{tpu_custom_call.1}
  #allocation0 [shape = 'u32[]', space=smem, size = 0x4, offset = 0x4, fixed_abs, tag = 'smem constant byte address 0x4 - core index']
  #allocation1 [shape = 'u32[144,128]{1,0:T(1,128)}', space=vmem, size = 0x12000, scoped, tag = 'internal scratch']
  %s0 = inlined_call_operand.hbm [shape: f32[1,128], index: 0, kind: input, shape index: {}]
  %s1 = inlined_call_operand.vmem [shape: f32[1,128], index: 1, kind: input, shape index: {}]
  %s2 = inlined_call_operand.vmem [shape: f32[1,128], index: 2, kind: input, shape index: {}]
  %s3 = inlined_call_operand.vmem [shape: f32[1,128], index: 3, kind: input, shape index: {}]
  %s4 = inlined_call_operand.vmem [shape: f32[1,128], index: 4, kind: input, shape index: {}]
  %s5 = inlined_call_operand.vmem [shape: f32[1,128], index: 5, kind: input, shape index: {}]
  %s6 = inlined_call_operand.vmem [shape: f32[1,128], index: 6, kind: input, shape index: {}]
  %s7 = inlined_call_operand.vmem [shape: f32[1,128], index: 7, kind: input, shape index: {}]
  %s8 = inlined_call_operand.vmem [shape: s8[1,128], index: 8, kind: input, shape index: {}]
  %s9 = inlined_call_operand.vmem [shape: s8[1,128], index: 9, kind: input, shape index: {}]
  %s10 = inlined_call_operand.hbm [shape: f32[1,4,1,128], index: 10, kind: output, shape index: {}]
  %s11 = sld [smem:[#allocation0]]
  $region58: #{tpu_custom_call.1} parent=0
    _
  %s13 = ssub.s32 1, %s11
  %s14 = scalar_select 0, %s13, %s11
  $region1: #{tpu_custom_call.1} parent=0
    #allocation2 [shape = 'u8[512]{0}', space=vmem, size = 0x400, scoped, tag = 'input window, operand 0, single buffered']
    #allocation3 [shape = 's32[1]{0}', space=sflag, size = 0x4, scoped, tag = 'scoped memory for tpu_custom_call.1']
    #allocation4 [shape = 's32[1]{0}', space=sflag, size = 0x4, scoped, tag = 'scoped memory for tpu_custom_call.1']
    #allocation5 [shape = 'u8[2048]{0}', space=vmem, size = 0x800, scoped, tag = 'output window, operand 0, single buffered']
    %15 = vsyncpa [#allocation3], 0
    %16 = vsyncpa [#allocation4], 0
    // Predicated region
    $region2: #{tpu_custom_call.1} parent=1 // pred_check
      _
    $region3: #{tpu_custom_call.1} parent=1 // pred_check_branch
      %18 = sbr.rel (0) target = $region5
    $region4: #{tpu_custom_call.1} parent=1 // pred_region
      %s19 = sadd.s32 0, 0
      %s21 = ssub.s32 16, 16
      %22 = vsyncadd [#allocation3], %s21
      %s23 = smul.addr %s19, 16
      %s24 = scalar_lea.hbm %s0, %s23
      %s26 = sshll.u32 [#allocation2], 4
      %s27 = int_to_ptr.vmem [resolvable:$true] %s26
      %29 = dma.hbm_to_vmem [thread:$0]  %s24, 16, %s27, [#allocation3]
    $region5: #{tpu_custom_call.1} parent=1 // pred_fallthru
      _
    // Predicated region
    $region6: #{tpu_custom_call.1} parent=1 // pred_check
      _
    $region7: #{tpu_custom_call.1} parent=1 // pred_check_branch
      %31 = sbr.rel (0) target = $region9
    $region8: #{tpu_custom_call.1} parent=1 // pred_region
      %s32 = sadd.s32 0, 0
      %p33 = scmp.lt.s32.totalorder %s32, 0
      %s34 = scalar_select %p33, %s32, 0
      %s35 = scalar_lea.vmem %s1, %s34
      %s36 = sadd.s32 0, 0
    $region9: #{tpu_custom_call.1} parent=1 // pred_fallthru
      _
    // Predicated region
    $region10: #{tpu_custom_call.1} parent=1 // pred_check
      _
    $region11: #{tpu_custom_call.1} parent=1 // pred_check_branch
      %38 = sbr.rel (0) target = $region13
    $region12: #{tpu_custom_call.1} parent=1 // pred_region
      %s39 = sadd.s32 0, 0
      %p40 = scmp.lt.s32.totalorder %s39, 0
      %s41 = scalar_select %p40, %s39, 0
      %s42 = scalar_lea.vmem %s2, %s41
      %s43 = sadd.s32 0, 0
    $region13: #{tpu_custom_call.1} parent=1 // pred_fallthru
      _
    // Predicated region
    $region14: #{tpu_custom_call.1} parent=1 // pred_check
      _
    $region15: #{tpu_custom_call.1} parent=1 // pred_check_branch
      %45 = sbr.rel (0) target = $region17
    $region16: #{tpu_custom_call.1} parent=1 // pred_region
      %s46 = sadd.s32 0, 0
      %p47 = scmp.lt.s32.totalorder %s46, 0
      %s48 = scalar_select %p47, %s46, 0
      %s49 = scalar_lea.vmem %s3, %s48
      %s50 = sadd.s32 0, 0
    $region17: #{tpu_custom_call.1} parent=1 // pred_fallthru
      _
    // Predicated region
    $region18: #{tpu_custom_call.1} parent=1 // pred_check
      _
    $region19: #{tpu_custom_call.1} parent=1 // pred_check_branch
      %52 = sbr.rel (0) target = $region21
    $region20: #{tpu_custom_call.1} parent=1 // pred_region
      %s53 = sadd.s32 0, 0
      %p54 = scmp.lt.s32.totalorder %s53, 0
      %s55 = scalar_select %p54, %s53, 0
      %s56 = scalar_lea.vmem %s4, %s55
      %s57 = sadd.s32 0, 0
    $region21: #{tpu_custom_call.1} parent=1 // pred_fallthru
      _
    // Predicated region
    $region22: #{tpu_custom_call.1} parent=1 // pred_check
      _
    $region23: #{tpu_custom_call.1} parent=1 // pred_check_branch
      %59 = sbr.rel (0) target = $region25
    $region24: #{tpu_custom_call.1} parent=1 // pred_region
      %s60 = sadd.s32 0, 0
      %p61 = scmp.lt.s32.totalorder %s60, 0
      %s62 = scalar_select %p61, %s60, 0
      %s63 = scalar_lea.vmem %s5, %s62
      %s64 = sadd.s32 0, 0
    $region25: #{tpu_custom_call.1} parent=1 // pred_fallthru
      _
    // Predicated region
    $region26: #{tpu_custom_call.1} parent=1 // pred_check
      _
    $region27: #{tpu_custom_call.1} parent=1 // pred_check_branch
      %66 = sbr.rel (0) target = $region29
    $region28: #{tpu_custom_call.1} parent=1 // pred_region
      %s67 = sadd.s32 0, 0
      %p68 = scmp.lt.s32.totalorder %s67, 0
      %s69 = scalar_select %p68, %s67, 0
      %s70 = scalar_lea.vmem %s6, %s69
      %s71 = sadd.s32 0, 0
    $region29: #{tpu_custom_call.1} parent=1 // pred_fallthru
      _
    // Predicated region
    $region30: #{tpu_custom_call.1} parent=1 // pred_check
      _
    $region31: #{tpu_custom_call.1} parent=1 // pred_check_branch
      %73 = sbr.rel (0) target = $region33
    $region32: #{tpu_custom_call.1} parent=1 // pred_region
      %s74 = sadd.s32 0, 0
      %p75 = scmp.lt.s32.totalorder %s74, 0
      %s76 = scalar_select %p75, %s74, 0
      %s77 = scalar_lea.vmem %s7, %s76
      %s78 = sadd.s32 0, 0
    $region33: #{tpu_custom_call.1} parent=1 // pred_fallthru
      _
    // Predicated region
    $region34: #{tpu_custom_call.1} parent=1 // pred_check
      _
    $region35: #{tpu_custom_call.1} parent=1 // pred_check_branch
      %80 = sbr.rel (0) target = $region37
    $region36: #{tpu_custom_call.1} parent=1 // pred_region
      %s81 = sadd.s32 0, 0
      %p82 = scmp.lt.s32.totalorder %s81, 0
      %s83 = scalar_select %p82, %s81, 0
      %s84 = scalar_lea.vmem %s8, %s83
      %s85 = sadd.s32 0, 0
    $region37: #{tpu_custom_call.1} parent=1 // pred_fallthru
      _
    // Predicated region
    $region38: #{tpu_custom_call.1} parent=1 // pred_check
      _
    $region39: #{tpu_custom_call.1} parent=1 // pred_check_branch
      %87 = sbr.rel (0) target = $region41
    $region40: #{tpu_custom_call.1} parent=1 // pred_region
      %s88 = sadd.s32 0, 0
      %p89 = scmp.lt.s32.totalorder %s88, 0
      %s90 = scalar_select %p89, %s88, 0
      %s91 = scalar_lea.vmem %s9, %s90
      %s92 = sadd.s32 0, 0
    $region41: #{tpu_custom_call.1} parent=1 // pred_fallthru
      _
    // Predicated region
    $region42: #{tpu_custom_call.1} parent=1 // pred_check
      _
    $region43: #{tpu_custom_call.1} parent=1 // pred_check_branch
      %94 = sbr.rel (0) target = $region45
    $region44: #{tpu_custom_call.1} parent=1 // pred_region
      %95 = dma.done [#allocation3], 16
    $region45: #{tpu_custom_call.1} parent=1 // pred_fallthru
      _
    %s96 = sadd.s32 0, 0
    %p97 = scmp.lt.s32.totalorder %s96, 0
    %s98 = scalar_select %p97, %s96, 0
    %s99 = scalar_lea.vmem %s1, %s98
    %s100 = sadd.s32 0, 0
    %p101 = scmp.lt.s32.totalorder %s100, 0
    %s102 = scalar_select %p101, %s100, 0
    %s103 = scalar_lea.vmem %s2, %s102
    %s104 = sadd.s32 0, 0
    %p105 = scmp.lt.s32.totalorder %s104, 0
    %s106 = scalar_select %p105, %s104, 0
    %s107 = scalar_lea.vmem %s3, %s106
    %s108 = sadd.s32 0, 0
    %p109 = scmp.lt.s32.totalorder %s108, 0
    %s110 = scalar_select %p109, %s108, 0
    %s111 = scalar_lea.vmem %s4, %s110
    %s112 = sadd.s32 0, 0
    %p113 = scmp.lt.s32.totalorder %s112, 0
    %s114 = scalar_select %p113, %s112, 0
    %s115 = scalar_lea.vmem %s5, %s114
    %s116 = sadd.s32 0, 0
    %p117 = scmp.lt.s32.totalorder %s116, 0
    %s118 = scalar_select %p117, %s116, 0
    %s119 = scalar_lea.vmem %s6, %s118
    %s120 = sadd.s32 0, 0
    %p121 = scmp.lt.s32.totalorder %s120, 0
    %s122 = scalar_select %p121, %s120, 0
    %s123 = scalar_lea.vmem %s7, %s122
    %s124 = sadd.s32 0, 0
    %p125 = scmp.lt.s32.totalorder %s124, 0
    %s126 = scalar_select %p125, %s124, 0
    %s127 = scalar_lea.vmem %s8, %s126
    %s128 = sadd.s32 0, 0
    %p129 = scmp.lt.s32.totalorder %s128, 0
    %s130 = scalar_select %p129, %s128, 0
    %s131 = scalar_lea.vmem %s9, %s130
    %s132 = sadd.s32 0, 0
    %s133 = sadd.s32 0, 0
    %p134 = scmp.lt.s32.totalorder %s133, 0
    %s135 = scalar_select %p134, %s133, 0
    %s136 = scalar_lea.vmem %s1, %s135
    %s137 = sadd.s32 0, 0
    %s138 = sadd.s32 0, 0
    %p139 = scmp.lt.s32.totalorder %s138, 0
    %s140 = scalar_select %p139, %s138, 0
    %s141 = scalar_lea.vmem %s2, %s140
    %s142 = sadd.s32 0, 0
    %s143 = sadd.s32 0, 0
    %p144 = scmp.lt.s32.totalorder %s143, 0
    %s145 = scalar_select %p144, %s143, 0
    %s146 = scalar_lea.vmem %s3, %s145
    %s147 = sadd.s32 0, 0
    %s148 = sadd.s32 0, 0
    %p149 = scmp.lt.s32.totalorder %s148, 0
    %s150 = scalar_select %p149, %s148, 0
    %s151 = scalar_lea.vmem %s4, %s150
    %s152 = sadd.s32 0, 0
    %s153 = sadd.s32 0, 0
    %p154 = scmp.lt.s32.totalorder %s153, 0
    %s155 = scalar_select %p154, %s153, 0
    %s156 = scalar_lea.vmem %s5, %s155
    %s157 = sadd.s32 0, 0
    %s158 = sadd.s32 0, 0
    %p159 = scmp.lt.s32.totalorder %s158, 0
    %s160 = scalar_select %p159, %s158, 0
    %s161 = scalar_lea.vmem %s6, %s160
    %s162 = sadd.s32 0, 0
    %s163 = sadd.s32 0, 0
    %p164 = scmp.lt.s32.totalorder %s163, 0
    %s165 = scalar_select %p164, %s163, 0
    %s166 = scalar_lea.vmem %s7, %s165
    %s167 = sadd.s32 0, 0
    %s168 = sadd.s32 0, 0
    %p169 = scmp.lt.s32.totalorder %s168, 0
    %s170 = scalar_select %p169, %s168, 0
    %s171 = scalar_lea.vmem %s8, %s170
    %s172 = sadd.s32 0, 0
    %s173 = sadd.s32 0, 0
    %p174 = scmp.lt.s32.totalorder %s173, 0
    %s175 = scalar_select %p174, %s173, 0
    %s176 = scalar_lea.vmem %s9, %s175
    %s177 = sadd.s32 0, 0
    %p178 = scmp.eq.s32.totalorder 0, 0
    // Predicated region
    $region46: #{tpu_custom_call.1} parent=1 // pred_check
      %p179 = pneg %p178
    $region47: #{tpu_custom_call.1} parent=1 // pred_check_branch
      %181 = sbr.rel (%p179) target = $region49
    $region48: #{tpu_custom_call.1} parent=1 // pred_region
      %182 = vst [vmem:[#allocation5] sm:$0x1] 0.0
      %183 = vst [vmem:[#allocation5 + $0x1] sm:$0x1] 0.0
      %184 = vst [vmem:[#allocation5 + $0x2] sm:$0x1] 0.0
      %185 = vst [vmem:[#allocation5 + $0x3] sm:$0x1] 0.0
    $region49: #{tpu_custom_call.1} parent=1 // pred_fallthru
      _
    %v186 = vld [vmem:[#allocation2] sm:$0x1]
    %v187 = vld [vmem:[%s136] sm:$0x1]
    %v188 = vsub.f32 %v186, %v187
    %v189 = vand.u32 2147483647, %v188
    %v190 = vld [vmem:[%s171] sm:$0x1]
    %v191 = vunpack.c.0.s8 %v190
    %vm192 = vcmp.ne.s32.totalorder %v191, 0
    %v193 = vsel %vm192, %v189, 0.0
    %v194 = vld [vmem:[#allocation5] sm:$0x1]
    %v195 = vadd.f32 %v193, 0.0
    %v196 = vadd.f32 %v194, %v195
    %197 = vst [vmem:[#allocation5] sm:$0x1] %v196
    %v198 = vld [vmem:[%s141] sm:$0x1]
    %v199 = vld [vmem:[%s146] sm:$0x1]
    %v200 = vsub.f32 %v198, %v199
    %v201 = vand.u32 2147483647, %v200
    %v202 = vld [vmem:[%s171] sm:$0x1]
    %v203 = vunpack.c.0.s8 %v202
    %vm204 = vcmp.ne.s32.totalorder %v203, 0
    %v205 = vsel %vm204, %v201, 0.0
    %s206 = scalar_lea.vmem [#allocation5], 1
    %v207 = vld [vmem:[%s206] sm:$0x1]
    %v208 = vadd.f32 %v205, 0.0
    %v209 = vadd.f32 %v207, %v208
    %210 = vst [vmem:[%s206] sm:$0x1] %v209
    %v211 = vld [vmem:[%s151] sm:$0x1]
    %v212 = vld [vmem:[%s156] sm:$0x1]
    %v213 = vsub.f32 %v211, %v212
    %v214 = vand.u32 2147483647, %v213
    %v215 = vld [vmem:[%s176] sm:$0x1]
    %v216 = vunpack.c.0.s8 %v215
    %vm217 = vcmp.ne.s32.totalorder %v216, 0
    %v218 = vsel %vm217, %v214, 0.0
    %s219 = scalar_lea.vmem [#allocation5], 2
    %v220 = vld [vmem:[%s219] sm:$0x1]
    %v221 = vadd.f32 %v218, 0.0
    %v222 = vadd.f32 %v220, %v221
    %223 = vst [vmem:[%s219] sm:$0x1] %v222
    %v224 = vld [vmem:[%s161] sm:$0x1]
    %v225 = vld [vmem:[%s166] sm:$0x1]
    %v226 = vsub.f32 %v224, %v225
    %v227 = vand.u32 2147483647, %v226
    %v228 = vld [vmem:[%s176] sm:$0x1]
    %v229 = vunpack.c.0.s8 %v228
    %vm230 = vcmp.ne.s32.totalorder %v229, 0
    %v231 = vsel %vm230, %v227, 0.0
    %s232 = scalar_lea.vmem [#allocation5], 3
    %v233 = vld [vmem:[%s232] sm:$0x1]
    %v234 = vadd.f32 %v231, 0.0
    %v235 = vadd.f32 %v233, %v234
    %236 = vst [vmem:[%s232] sm:$0x1] %v235
    // Predicated region
    $region50: #{tpu_custom_call.1} parent=1 // pred_check
      _
    $region51: #{tpu_custom_call.1} parent=1 // pred_check_branch
      %238 = sbr.rel (0) target = $region53
    $region52: #{tpu_custom_call.1} parent=1 // pred_region
      %s240 = ssub.s32 64, 64
      %241 = vsyncadd [#allocation4], %s240
      %s242 = sshll.u32 [#allocation5], 4
      %s243 = int_to_ptr.vmem [resolvable:$true] %s242
      %248 = dma.vmem_to_hbm [thread:$0]  %s243, 64, %s10, [#allocation4], 16, 16, 1
    $region53: #{tpu_custom_call.1} parent=1 // pred_fallthru
      _
    // Predicated region
    $region54: #{tpu_custom_call.1} parent=1 // pred_check
      _
    $region55: #{tpu_custom_call.1} parent=1 // pred_check_branch
      %250 = sbr.rel (0) target = $region57
    $region56: #{tpu_custom_call.1} parent=1 // pred_region
      %251 = dma.done [#allocation4], 64
    $region57: #{tpu_custom_call.1} parent=1 // pred_fallthru
      _
    %252 = vsyncpa [#allocation3], 1
    %253 = vsyncpa [#allocation4], 1

</llo_original>
